<compile_context>
chip_gen: v6e
topology: v6e:2x2x1
jax: 0.10.0
libtpu: 0.0.40
codegen_flags: <defaults>
</compile_context>

<pallas_src>
import jax
import jax.numpy as jnp
from jax.experimental import pallas as pl
from jax.experimental.pallas import tpu as pltpu


def _make_conv_relu_gemm_kernel(relu_type):
    """Fused (W @ cols) + bias + activation on one lane tile."""

    def kernel(w_ref, b_ref, x_ref, o_ref):
        # w_ref : VMEM (C_out, C_in*k*k)   resident across grid steps
        # b_ref : VMEM (C_out, 1)          resident across grid steps
        # x_ref : VMEM (C_in*k*k, tL)      im2col columns for this lane tile
        # o_ref : VMEM (C_out, tL)
        y = jnp.dot(w_ref[...], x_ref[...], preferred_element_type=jnp.float32)
        y = y + b_ref[...]                       # lane broadcast of the bias
        if relu_type == 'relu':
            y = jnp.maximum(y, 0.0)
        elif relu_type == 'relu6':
            y = jnp.clip(y, 0.0, 6.0)
        # relu_type is None -> linear
        o_ref[...] = y.astype(o_ref.dtype)

    return kernel


def conv_relu(x, w, b, *, stride=1, padding=0, relu_type='relu', lane_tile=None):
    """Conv_ReLU forward: act(conv2d(x, w, stride=1, padding) + b).

    x: (N, C_in, H, W); w: (C_out, C_in, k, k); b: (C_out,).
    """
    assert stride == 1, "TODO(synk): stride > 1 path not implemented"
    if relu_type not in ('relu', 'relu6', None):
        # TODO(synk): 'prelu' needs the learned slope parameter.
        raise NotImplementedError(relu_type)

    N, C_in, H, W = x.shape
    C_out, C_in_w, kh, kw_ = w.shape
    assert C_in_w == C_in and kh == kw_, "square kernel, matching channels"
    k = kh

    orig_dtype = x.dtype
    xf32 = x.astype(jnp.float32)

    Hp, Wp = H + 2 * padding, W + 2 * padding
    Ho, Wo = Hp - k + 1, Wp - k + 1
    CKK = C_in * k * k
    L = N * Ho * Wo

    # --- wrapper-side layout plumbing (no FLOPs) ------------------------------
    xp = jnp.pad(xf32, ((0, 0), (0, 0), (padding, padding), (padding, padding)))

    # im2col: cols[ci*k*k + ky*k + kx, n*Ho*Wo + ho*Wo + wo] = xp[n, ci, ho+ky, wo+kx]
    taps = [xp[:, :, ky:ky + Ho, kx:kx + Wo]           # (N, C_in, Ho, Wo)
            for ky in range(k) for kx in range(k)]
    cols = jnp.stack(taps, axis=2)                      # (N, C_in, k*k, Ho, Wo)
    cols = cols.reshape(N, CKK, Ho * Wo)
    cols = jnp.transpose(cols, (1, 0, 2)).reshape(CKK, L)

    # Weight matrix: (C_out, C_in, k, k) -> (C_out, C_in*k*k); ordering matches cols.
    w_mat = w.astype(jnp.float32).reshape(C_out, CKK)
    b_col = b.astype(jnp.float32).reshape(C_out, 1)

    # --- lane tiling ----------------------------------------------------------
    if lane_tile is None:
        budget = 2 * 1024 * 1024                         # bytes per cols tile
        max_tl = max(128, (budget // (4 * max(CKK, 1))) // 128 * 128)
        lane_tile = min(max_tl, pl.cdiv(L, 128) * 128, 2048)
        lane_tile = max(128, lane_tile)
    lane_tile = (max(128, lane_tile) // 128) * 128

    Lpad = pl.cdiv(L, lane_tile) * lane_tile
    if Lpad != L:
        cols = jnp.pad(cols, ((0, 0), (0, Lpad - L)))    # zero cols, cropped later

    tile_bytes = 4 * lane_tile * (CKK + C_out)
    const_bytes = 4 * (C_out * CKK + C_out)
    vmem_limit = int(min(100 * 2**20,
                         max(8 * 2**20, 4 * tile_bytes + 2 * const_bytes)))

    kernel = _make_conv_relu_gemm_kernel(relu_type)

    out_flat = pl.pallas_call(
        kernel,
        out_shape=jax.ShapeDtypeStruct((C_out, Lpad), jnp.float32),
        grid=(Lpad // lane_tile,),
        in_specs=[
            pl.BlockSpec((C_out, CKK), lambda i: (0, 0)),        # weights (resident)
            pl.BlockSpec((C_out, 1), lambda i: (0, 0)),          # bias (resident)
            pl.BlockSpec((CKK, lane_tile), lambda i: (0, i)),    # im2col columns
        ],
        out_specs=pl.BlockSpec((C_out, lane_tile), lambda i: (0, i)),
        compiler_params=pltpu.CompilerParams(
            dimension_semantics=("parallel",),   # lane tiles are independent
            vmem_limit_bytes=vmem_limit,
        ),
    )(w_mat, b_col, cols)

    out = out_flat[:, :L].reshape(C_out, N, Ho, Wo)
    out = jnp.transpose(out, (1, 0, 2, 3))               # -> (N, C_out, Ho, Wo)
    return out.astype(orig_dtype)


def conv_relu_reference(x, w, b, *, stride=1, padding=0, relu_type='relu'):
    """Pure-JAX reference matching the PyTorch Conv_ReLU forward."""
    y = jax.lax.conv_general_dilated(
        x, w, window_strides=(stride, stride),
        padding=[(padding, padding), (padding, padding)],
        dimension_numbers=("NCHW", "OIHW", "NCHW"),
        precision=jax.lax.Precision.HIGHEST)
    y = y + b.reshape(1, -1, 1, 1)
    if relu_type == 'relu':
        y = jax.nn.relu(y)
    elif relu_type == 'relu6':
        y = jnp.clip(y, 0.0, 6.0)
    return y


if __name__ == "__main__":
    # Deterministic synthetic params / inputs (no checkpoint loading).
    key = jax.random.PRNGKey(0)
    kx, kw, kb = jax.random.split(key, 3)

    # Conv_ReLU(in_chs=4, out_chs=8, k=3, s=1, p=1, relu_type='relu')
    N, C_in, H, W = 2, 4, 16, 16
    C_out, K = 8, 3
    x = jax.random.normal(kx, (N, C_in, H, W), dtype=jnp.float32)
    w = jax.random.normal(kw, (C_out, C_in, K, K), dtype=jnp.float32) * 0.1
    b = jax.random.normal(kb, (C_out,), dtype=jnp.float32) * 0.1

    out = conv_relu(x, w, b, stride=1, padding=1, relu_type='relu')
    out = jax.block_until_ready(out)
    ref = conv_relu_reference(x, w, b, stride=1, padding=1, relu_type='relu')
    assert out.shape == ref.shape == (N, C_out, H, W)
    err = jnp.max(jnp.abs(out - ref))
    assert jnp.allclose(out, ref, atol=5e-3, rtol=5e-3), f"max abs err = {err}"

    # Second config: Conv_ReLU(8, 16, k=5, s=1, p=2) — same kernel code path.
    k2x, k2w, k2b = jax.random.split(jax.random.PRNGKey(1), 3)
    x2 = jax.random.normal(k2x, (2, 8, 16, 16), dtype=jnp.float32)
    w2 = jax.random.normal(k2w, (16, 8, 5, 5), dtype=jnp.float32) * 0.05
    b2 = jax.random.normal(k2b, (16,), dtype=jnp.float32) * 0.1
    out2 = jax.block_until_ready(
        conv_relu(x2, w2, b2, stride=1, padding=2, relu_type='relu'))
    ref2 = conv_relu_reference(x2, w2, b2, stride=1, padding=2, relu_type='relu')
    err2 = jnp.max(jnp.abs(out2 - ref2))
    assert jnp.allclose(out2, ref2, atol=5e-3, rtol=5e-3), f"max abs err = {err2}"

    print("KERNEL_OK")
</pallas_src>

<mosaic_0001>
module attributes {stable_mosaic.version = 11 : i64} {
  func.func @kernel(%arg0: i32, %arg1: memref<8x36xf32, #tpu.memory_space<vmem>>, %arg2: memref<8x1xf32, #tpu.memory_space<vmem>>, %arg3: memref<36x512xf32, #tpu.memory_space<vmem>>, %arg4: memref<8x512xf32, #tpu.memory_space<vmem>>) attributes {dimension_semantics = [#tpu.dimension_semantics<parallel>], iteration_bounds = array<i64: 1>, scalar_prefetch = 0 : i64, scratch_operands = 0 : i64, tpu.core_type = #tpu.core_type<tc>, window_params = [{pipeline_mode = #tpu.pipeline_mode<synchronous>, transform_indices = @transform_0, window_bounds = array<i64: 8, 36>}, {pipeline_mode = #tpu.pipeline_mode<synchronous>, transform_indices = @transform_1, window_bounds = array<i64: 8, 1>}, {transform_indices = @transform_2, window_bounds = array<i64: 36, 512>}, {transform_indices = @transform_3, window_bounds = array<i64: 8, 512>}]} {
    %c0 = arith.constant 0 : index
    %c0_0 = arith.constant 0 : index
    %0 = vector.load %arg1[%c0, %c0_0] : memref<8x36xf32, #tpu.memory_space<vmem>>, vector<8x36xf32>
    %c0_1 = arith.constant 0 : index
    %c0_2 = arith.constant 0 : index
    %1 = vector.load %arg3[%c0_1, %c0_2] : memref<36x512xf32, #tpu.memory_space<vmem>>, vector<36x512xf32>
    %cst = arith.constant dense<0.000000e+00> : vector<8x512xf32>
    %2 = tpu.matmul %0, %1, %cst {dimension_numbers = #tpu.dot_dimension_numbers<[1], [0], [0], [1], [0, 0, 1, 1], [], []>} : vector<8x36xf32>, vector<36x512xf32>, vector<8x512xf32> -> vector<8x512xf32>
    %c0_3 = arith.constant 0 : index
    %c0_4 = arith.constant 0 : index
    %3 = vector.load %arg2[%c0_3, %c0_4] : memref<8x1xf32, #tpu.memory_space<vmem>>, vector<8x1xf32>
    %4 = vector.broadcast %3 : vector<8x1xf32> to vector<8x512xf32>
    %5 = arith.addf %2, %4 : vector<8x512xf32>
    %cst_5 = arith.constant 0.000000e+00 : f32
    %6 = vector.broadcast %cst_5 : f32 to vector<8x512xf32>
    %7 = arith.maximumf %5, %6 : vector<8x512xf32>
    %c0_6 = arith.constant 0 : index
    %c0_7 = arith.constant 0 : index
    %8 = vector.load %arg4[%c0_6, %c0_7] : memref<8x512xf32, #tpu.memory_space<vmem>>, vector<8x512xf32>
    tpu.vector_store %arg4[%c0_6, %c0_7], %7 {strides = array<i32>} : memref<8x512xf32, #tpu.memory_space<vmem>>, vector<8x512xf32>,
    return
  }
  func.func @transform_0(%arg0: i32) -> (i32, i32) {
    %c0_i32 = arith.constant 0 : i32
    %c0_i32_0 = arith.constant 0 : i32
    %c0_i32_1 = arith.constant 0 : i32
    return %c0_i32, %c0_i32_0 : i32, i32
  }
  func.func @transform_1(%arg0: i32) -> (i32, i32) {
    %c0_i32 = arith.constant 0 : i32
    %c0_i32_0 = arith.constant 0 : i32
    %c0_i32_1 = arith.constant 0 : i32
    return %c0_i32, %c0_i32_0 : i32, i32
  }
  func.func @transform_2(%arg0: i32) -> (i32, i32) {
    %c0_i32 = arith.constant 0 : i32
    %c0_i32_0 = arith.constant 0 : i32
    return %c0_i32, %arg0 : i32, i32
  }
  func.func @transform_3(%arg0: i32) -> (i32, i32) {
    %c0_i32 = arith.constant 0 : i32
    %c0_i32_0 = arith.constant 0 : i32
    return %c0_i32, %arg0 : i32, i32
  }
}

</mosaic_0001>

<llo_original>
// kernel: tpu_custom_call.1
$region0: #{tpu_custom_call.1}
  #allocation0 [shape = 'u32[]', space=smem, size = 0x4, offset = 0x4, fixed_abs, tag = 'smem constant byte address 0x4 - core index']
  #allocation1 [shape = 'u32[144,128]{1,0:T(1,128)}', space=vmem, size = 0x12000, scoped, tag = 'internal scratch']
  %s0 = inlined_call_operand.vmem [shape: f32[8,36], index: 0, kind: input, shape index: {}]
  %s1 = inlined_call_operand.vmem [shape: f32[8,1], index: 1, kind: input, shape index: {}]
  %s2 = inlined_call_operand.hbm [shape: f32[36,512], index: 2, kind: input, shape index: {}]
  %s3 = inlined_call_operand.hbm [shape: f32[8,512], index: 3, kind: output, shape index: {}]
  %s4 = sld [smem:[#allocation0]]
  $region26: #{tpu_custom_call.1} parent=0
    _
  %s6 = ssub.s32 1, %s4
  %s7 = scalar_select 0, %s6, %s4
  $region1: #{tpu_custom_call.1} parent=0
    #allocation2 [shape = 'u8[81920]{0}', space=vmem, size = 0x14000, scoped, tag = 'input window, operand 2, single buffered']
    #allocation3 [shape = 's32[1]{0}', space=sflag, size = 0x4, scoped, tag = 'scoped memory for tpu_custom_call.1']
    #allocation4 [shape = 's32[1]{0}', space=sflag, size = 0x4, scoped, tag = 'scoped memory for tpu_custom_call.1']
    #allocation5 [shape = 'u8[16384]{0}', space=vmem, size = 0x4000, scoped, tag = 'output window, operand 0, single buffered']
    %8 = vsyncpa [#allocation3], 0
    %9 = vsyncpa [#allocation4], 0
    // Predicated region
    $region2: #{tpu_custom_call.1} parent=1 // pred_check
      _
    $region3: #{tpu_custom_call.1} parent=1 // pred_check_branch
      %11 = sbr.rel (0) target = $region5
    $region4: #{tpu_custom_call.1} parent=1 // pred_region
      _
    $region5: #{tpu_custom_call.1} parent=1 // pred_fallthru
      _
    // Predicated region
    $region6: #{tpu_custom_call.1} parent=1 // pred_check
      _
    $region7: #{tpu_custom_call.1} parent=1 // pred_check_branch
      %13 = sbr.rel (0) target = $region9
    $region8: #{tpu_custom_call.1} parent=1 // pred_region
      _
    $region9: #{tpu_custom_call.1} parent=1 // pred_fallthru
      _
    // Predicated region
    $region10: #{tpu_custom_call.1} parent=1 // pred_check
      _
    $region11: #{tpu_custom_call.1} parent=1 // pred_check_branch
      %15 = sbr.rel (0) target = $region13
    $region12: #{tpu_custom_call.1} parent=1 // pred_region
      %s17 = ssub.s32 2560, 2560
      %18 = vsyncadd [#allocation3], %s17
      %s19 = sshll.u32 [#allocation2], 4
      %s20 = int_to_ptr.vmem [resolvable:$true] %s19
      %25 = dma.hbm_to_vmem [thread:$0]  %s2, 2560, %s20, [#allocation3], 512, 512, 32
    $region13: #{tpu_custom_call.1} parent=1 // pred_fallthru
      _
    // Predicated region
    $region14: #{tpu_custom_call.1} parent=1 // pred_check
      _
    $region15: #{tpu_custom_call.1} parent=1 // pred_check_branch
      %27 = sbr.rel (0) target = $region17
    $region16: #{tpu_custom_call.1} parent=1 // pred_region
      %28 = dma.done [#allocation3], 2560
    $region17: #{tpu_custom_call.1} parent=1 // pred_fallthru
      _
    %v29 = vld [vmem:[%s0] sm:$0xff]
    %v30 = vld [vmem:[#allocation2] sm:$0xff]
    %v31 = vld [vmem:[#allocation2 + $0x8] sm:$0xff]
    %v32 = vld [vmem:[#allocation2 + $0x10] sm:$0xff]
    %v33 = vld [vmem:[#allocation2 + $0x18] sm:$0xff]
    %v34 = vld [vmem:[#allocation2 + $0x20] sm:$0xff]
    %v35 = vld [vmem:[#allocation2 + $0x28] sm:$0xff]
    %v36 = vld [vmem:[#allocation2 + $0x30] sm:$0xff]
    %v37 = vld [vmem:[#allocation2 + $0x38] sm:$0xff]
    %v38 = vld [vmem:[#allocation2 + $0x40] sm:$0xff]
    %v39 = vld [vmem:[#allocation2 + $0x48] sm:$0xff]
    %v40 = vld [vmem:[#allocation2 + $0x50] sm:$0xff]
    %v41 = vld [vmem:[#allocation2 + $0x58] sm:$0xff]
    %v42 = vld [vmem:[#allocation2 + $0x60] sm:$0xff]
    %v43 = vld [vmem:[#allocation2 + $0x68] sm:$0xff]
    %v44 = vld [vmem:[#allocation2 + $0x70] sm:$0xff]
    %v45 = vld [vmem:[#allocation2 + $0x78] sm:$0xff]
    %v46 = vld [vmem:[#allocation2 + $0x80] sm:$0xf]
    %v47 = vld [vmem:[#allocation2 + $0x88] sm:$0xf]
    %v48 = vld [vmem:[#allocation2 + $0x90] sm:$0xf]
    %v49 = vld [vmem:[#allocation2 + $0x98] sm:$0xf]
    %v50 = vld [vmem:[%s1] sm:$0xff]
    %52 = vset.pattern.permute.xlu0 0
    %53 = vperm.xlu0 %52, %v50
    %v54 = vpop.permute.xlu0 %53
    %vm56 = vcmask 293888
    %v58 = vsel %vm56, %v29, 0
    %vm60 = vcmask 1043456
    %v62 = vsel %vm60, %v46, 0
    %v65 = vsel %vm60, %v47, 0
    %v68 = vsel %vm60, %v48, 0
    %v71 = vsel %vm60, %v49, 0
    %73 = vmatprep.subr.mxu0 0.0
    %74 = vmatpush1.msra.mxu0 0.0
    %75 = vmatprep.subr.mxu0 0.0
    %76 = vmatpush1.msra.mxu0 0.0
    %77 = vmatprep.subr.mxu0 0.0
    %78 = vmatpush1.msra.mxu0 0.0
    %79 = vmatprep.subr.mxu0 0.0
    %80 = vmatpush1.msra.mxu0 0.0
    %81 = vmatprep.subr.mxu0 0.0
    %82 = vmatpush1.msra.mxu0 0.0
    %83 = vmatprep.subr.mxu0 0.0
    %84 = vmatpush1.msra.mxu0 0.0
    %85 = vmatprep.subr.mxu0 0.0
    %86 = vmatpush1.msra.mxu0 0.0
    %87 = vmatprep.subr.mxu0 0.0
    %88 = vmatpush1.msra.mxu0 0.0
    %89 = vmatprep.subr.mxu0 0.0
    %90 = vmatpush1.msra.mxu0 0.0
    %91 = vmatprep.subr.mxu0 0.0
    %92 = vmatpush1.msra.mxu0 0.0
    %93 = vmatprep.subr.mxu0 0.0
    %94 = vmatpush1.msra.mxu0 0.0
    %95 = vmatprep.subr.mxu0 %v65
    %96 = vmatpush1.msra.mxu0 %v62
    %97 = vmatprep.subr.mxu0 %v43
    %98 = vmatpush1.msra.mxu0 %v42
    %99 = vmatprep.subr.mxu0 %v39
    %100 = vmatpush1.msra.mxu0 %v38
    %101 = vmatprep.subr.mxu0 %v35
    %102 = vmatpush1.msra.mxu0 %v34
    %103 = vmatprep.subr.mxu0 %v31
    %104 = vmatpush1.msra.mxu0 %v30
    %105 = vmatprep.subr.mxu0 0.0
    %106 = vmatpush2.msra.mxu0 0.0
    %107 = vmatprep.subr.mxu0 0.0
    %108 = vmatpush2.msra.mxu0 0.0
    %109 = vmatprep.subr.mxu0 0.0
    %110 = vmatpush2.msra.mxu0 0.0
    %111 = vmatprep.subr.mxu0 0.0
    %112 = vmatpush2.msra.mxu0 0.0
    %113 = vmatprep.subr.mxu0 0.0
    %114 = vmatpush2.msra.mxu0 0.0
    %115 = vmatprep.subr.mxu0 0.0
    %116 = vmatpush2.msra.mxu0 0.0
    %117 = vmatprep.subr.mxu0 0.0
    %118 = vmatpush2.msra.mxu0 0.0
    %119 = vmatprep.subr.mxu0 0.0
    %120 = vmatpush2.msra.mxu0 0.0
    %121 = vmatprep.subr.mxu0 0.0
    %122 = vmatpush2.msra.mxu0 0.0
    %123 = vmatprep.subr.mxu0 0.0
    %124 = vmatpush2.msra.mxu0 0.0
    %125 = vmatprep.subr.mxu0 0.0
    %126 = vmatpush2.msra.mxu0 0.0
    %127 = vmatprep.subr.mxu0 0.0
    %128 = vmatpush2.msra.mxu0 0.0
    %129 = vmatprep.subr.mxu0 0.0
    %130 = vmatpush2.msra.mxu0 0.0
    %131 = vmatprep.subr.mxu0 0.0
    %132 = vmatpush2.msra.mxu0 0.0
    %133 = vmatprep.subr.mxu0 0.0
    %134 = vmatpush2.msra.mxu0 0.0
    %135 = vmatprep.subr.mxu0 0.0
    %136 = vmatpush2.msra.mxu0 0.0
    %137 = vmatprep.mubr.f32.mxu0 0.0
    %138 = vmatmul.mubr.f32.gmra.mxu0 %v58
    %v139 = vpop.f32.mrf.mxu0
    %v140 = vadd.f32 %v54, %v139
    %v141 = vpop.f32.mrf.mxu0
    %v142 = vadd.f32 %v54, %v141
    %143 = vdwg.mxu0
    %144 = vmatprep.subr.mxu0 0.0
    %145 = vmatpush1.msra.mxu0 0.0
    %146 = vmatprep.subr.mxu0 0.0
    %147 = vmatpush1.msra.mxu0 0.0
    %148 = vmatprep.subr.mxu0 0.0
    %149 = vmatpush1.msra.mxu0 0.0
    %150 = vmatprep.subr.mxu0 0.0
    %151 = vmatpush1.msra.mxu0 0.0
    %152 = vmatprep.subr.mxu0 0.0
    %153 = vmatpush1.msra.mxu0 0.0
    %154 = vmatprep.subr.mxu0 0.0
    %155 = vmatpush1.msra.mxu0 0.0
    %156 = vmatprep.subr.mxu0 0.0
    %157 = vmatpush1.msra.mxu0 0.0
    %158 = vmatprep.subr.mxu0 0.0
    %159 = vmatpush1.msra.mxu0 0.0
    %160 = vmatprep.subr.mxu0 0.0
    %161 = vmatpush1.msra.mxu0 0.0
    %162 = vmatprep.subr.mxu0 0.0
    %163 = vmatpush1.msra.mxu0 0.0
    %164 = vmatprep.subr.mxu0 0.0
    %165 = vmatpush1.msra.mxu0 0.0
    %166 = vmatprep.subr.mxu0 %v71
    %167 = vmatpush1.msra.mxu0 %v68
    %168 = vmatprep.subr.mxu0 %v45
    %169 = vmatpush1.msra.mxu0 %v44
    %170 = vmatprep.subr.mxu0 %v41
    %171 = vmatpush1.msra.mxu0 %v40
    %172 = vmatprep.subr.mxu0 %v37
    %173 = vmatpush1.msra.mxu0 %v36
    %174 = vmatprep.subr.mxu0 %v33
    %175 = vmatpush1.msra.mxu0 %v32
    %176 = vmatprep.subr.mxu0 0.0
    %177 = vmatpush2.msra.mxu0 0.0
    %178 = vmatprep.subr.mxu0 0.0
    %179 = vmatpush2.msra.mxu0 0.0
    %180 = vmatprep.subr.mxu0 0.0
    %181 = vmatpush2.msra.mxu0 0.0
    %182 = vmatprep.subr.mxu0 0.0
    %183 = vmatpush2.msra.mxu0 0.0
    %184 = vmatprep.subr.mxu0 0.0
    %185 = vmatpush2.msra.mxu0 0.0
    %186 = vmatprep.subr.mxu0 0.0
    %187 = vmatpush2.msra.mxu0 0.0
    %188 = vmatprep.subr.mxu0 0.0
    %189 = vmatpush2.msra.mxu0 0.0
    %190 = vmatprep.subr.mxu0 0.0
    %191 = vmatpush2.msra.mxu0 0.0
    %192 = vmatprep.subr.mxu0 0.0
    %193 = vmatpush2.msra.mxu0 0.0
    %194 = vmatprep.subr.mxu0 0.0
    %195 = vmatpush2.msra.mxu0 0.0
    %196 = vmatprep.subr.mxu0 0.0
    %197 = vmatpush2.msra.mxu0 0.0
    %198 = vmatprep.subr.mxu0 0.0
    %199 = vmatpush2.msra.mxu0 0.0
    %200 = vmatprep.subr.mxu0 0.0
    %201 = vmatpush2.msra.mxu0 0.0
    %202 = vmatprep.subr.mxu0 0.0
    %203 = vmatpush2.msra.mxu0 0.0
    %204 = vmatprep.subr.mxu0 0.0
    %205 = vmatpush2.msra.mxu0 0.0
    %206 = vmatprep.subr.mxu0 0.0
    %207 = vmatpush2.msra.mxu0 0.0
    %208 = vmatprep.mubr.f32.mxu0 0.0
    %209 = vmatmul.mubr.f32.gmra.mxu0 %v58
    %v210 = vpop.f32.mrf.mxu0
    %v211 = vadd.f32 %v54, %v210
    %v212 = vpop.f32.mrf.mxu0
    %v213 = vadd.f32 %v54, %v212
    %214 = vdwg.mxu0
    %v215 = vmax.f32 %v140, 0.0
    %v216 = vmax.f32 %v142, 0.0
    %v217 = vmax.f32 %v211, 0.0
    %v218 = vmax.f32 %v213, 0.0
    %219 = vst [vmem:[#allocation5] sm:$0xff] %v215
    %220 = vst [vmem:[#allocation5 + $0x8] sm:$0xff] %v216
    %221 = vst [vmem:[#allocation5 + $0x10] sm:$0xff] %v217
    %222 = vst [vmem:[#allocation5 + $0x18] sm:$0xff] %v218
    // Predicated region
    $region18: #{tpu_custom_call.1} parent=1 // pred_check
      _
    $region19: #{tpu_custom_call.1} parent=1 // pred_check_branch
      %224 = sbr.rel (0) target = $region21
    $region20: #{tpu_custom_call.1} parent=1 // pred_region
      %s226 = ssub.s32 512, 512
      %227 = vsyncadd [#allocation4], %s226
      %s229 = sshll.u32 [#allocation5], 4
      %s230 = int_to_ptr.vmem [resolvable:$true] %s229
      %232 = dma.vmem_to_hbm [thread:$0]  %s230, 512, %s3, [#allocation4]
    $region21: #{tpu_custom_call.1} parent=1 // pred_fallthru
      _
    // Predicated region
    $region22: #{tpu_custom_call.1} parent=1 // pred_check
      _
    $region23: #{tpu_custom_call.1} parent=1 // pred_check_branch
      %234 = sbr.rel (0) target = $region25
    $region24: #{tpu_custom_call.1} parent=1 // pred_region
      %235 = dma.done [#allocation4], 512
    $region25: #{tpu_custom_call.1} parent=1 // pred_fallthru
      _
    %236 = vsyncpa [#allocation3], 1
    %237 = vsyncpa [#allocation4], 1

</llo_original>
